<compile_context>
chip_gen: v6e
topology: v6e:2x2x1
jax: 0.10.0
libtpu: 0.0.40
codegen_flags: <defaults>
</compile_context>

<pallas_src>
import jax
import jax.numpy as jnp
from jax.experimental import pallas as pl
from jax.experimental.pallas import tpu as pltpu

_G = 4  # logical rows packed into the lane dimension per packed row


def _matmul_kernel(x_ref, w_ref, o_ref):
    # x_ref: (tpm, G*V) VMEM, w_ref: (G*V, G*W) VMEM (resident), o_ref: (tpm, G*W)
    o_ref[...] = jnp.dot(
        x_ref[...], w_ref[...], preferred_element_type=jnp.float32
    ).astype(o_ref.dtype)


def _choose_packed_tile(mp_rows, tile_m):
    """Packed rows per grid step: multiple of 8, or full extent for tiny M."""
    tpm_target = max(8, (tile_m // _G // 8) * 8)
    if mp_rows <= tpm_target:
        if mp_rows >= 512:
            # Mid-size problem that fits one target tile: still split into
            # ~8 steps so v7x's 2 TCs share the rows and pipelining kicks in.
            tpm = -(-mp_rows // 8)            # ~1/8 of the packed rows
            return ((tpm + 7) // 8) * 8       # round up to sublane multiple
        return mp_rows                        # single full-extent block
    return tpm_target


def skeleton_transformer(x, trans_mat, *, tile_m=8192):
    """x: (n, c, t, v) float32, trans_mat: (v, out_joints) float32.

    tile_m: logical rows of the flattened (n*c*t, v) matrix per grid step
            (default 8192 -> 2048 packed rows, ~1 MiB per VMEM block).
    """
    n, c, t, v = x.shape
    vj, w = trans_mat.shape
    assert v == vj, "last dim of x must equal in_joints"
    m = n * c * t
    dtype = x.dtype

    # ---- pack G logical rows into the lane dimension -----------------------
    m_pad = -(-m // _G) * _G
    x2d = x.reshape(m, v)
    if m_pad != m:
        x2d = jnp.concatenate(
            [x2d, jnp.zeros((m_pad - m, v), dtype=dtype)], axis=0
        )
    mp_rows = m_pad // _G
    gv, gw = _G * v, _G * w
    x_packed = x2d.reshape(mp_rows, gv)
    # Block-diagonal weight: (x_packed @ w_packed)[r, g*w:(g+1)*w]
    #   = x2d[_G*r + g] @ trans_mat
    w_packed = jnp.kron(jnp.eye(_G, dtype=trans_mat.dtype), trans_mat)

    tpm = _choose_packed_tile(mp_rows, tile_m)
    grid_m = pl.cdiv(mp_rows, tpm)

    y_packed = pl.pallas_call(
        _matmul_kernel,
        out_shape=jax.ShapeDtypeStruct((mp_rows, gw), dtype),
        grid_spec=pl.GridSpec(
            grid=(grid_m,),
            in_specs=[
                # x tile: walk down the packed rows (last dim full-extent).
                pl.BlockSpec((tpm, gv), lambda i: (i, 0)),
                # weight: constant block index -> stays resident in VMEM.
                pl.BlockSpec((gv, gw), lambda i: (0, 0)),
            ],
            out_specs=pl.BlockSpec((tpm, gw), lambda i: (i, 0)),
        ),
        compiler_params=pltpu.CompilerParams(
            # Rows are independent -> parallel (v7x splits across its 2 TCs;
            # no-op on single-TC v5e/v6e).
            dimension_semantics=("parallel",),
        ),
        cost_estimate=pl.CostEstimate(
            flops=2 * m * v * w,
            transcendentals=0,
            bytes_accessed=(m * v + v * w + m * w) * x.dtype.itemsize,
        ),
    )(x_packed, w_packed)

    # (mp_rows, G*w) is row-major identical to (m_pad, w); drop pad rows.
    y2d = y_packed.reshape(m_pad, w)[:m]
    return y2d.reshape(n, c, t, w)


def init_orthogonal_trans_mat(key, in_joints, out_joints, dtype=jnp.float32):
    """Deterministic analogue of nn.init.orthogonal_ for (in_joints, out_joints)."""
    rows, cols = in_joints, out_joints
    flat_rows, flat_cols = (cols, rows) if rows < cols else (rows, cols)
    a = jax.random.normal(key, (flat_rows, flat_cols), dtype=jnp.float32)
    q, r = jnp.linalg.qr(a)
    d = jnp.sign(jnp.diagonal(r))
    q = q * d[None, :]
    if rows < cols:
        q = q.T
    return q.astype(dtype)


def reference(x, trans_mat):
    n, c, t, v = x.shape
    return (x.reshape(-1, v) @ trans_mat).reshape(n, c, t, -1)


if __name__ == "__main__":
    key = jax.random.PRNGKey(0)
    k_x, k_w, k_x2 = jax.random.split(key, 3)

    in_joints, out_joints = 25, 30
    trans_mat = init_orthogonal_trans_mat(k_w, in_joints, out_joints)

    # Small demo shape (single full-extent block path), module defaults.
    n, c, t = 2, 4, 16  # M = 128 -> 32 packed rows
    x = jax.random.normal(k_x, (n, c, t, in_joints), dtype=jnp.float32)

    y = skeleton_transformer(x, trans_mat)
    y = jax.block_until_ready(y)
    y_ref = reference(x, trans_mat)
    assert y.shape == (n, c, t, out_joints), y.shape
    assert jnp.allclose(y, y_ref, atol=1e-5, rtol=1e-5)

    # Larger M to exercise the tiled path + G=4 padding (M = 1806 is not a
    # multiple of 4) + a ragged last tile: 452 packed rows, tpm=128 -> 4 steps.
    n2, c2, t2 = 2, 3, 301  # M = 1806
    x2 = jax.random.normal(k_x2, (n2, c2, t2, in_joints), dtype=jnp.float32)
    y2 = skeleton_transformer(x2, trans_mat, tile_m=512)
    y2 = jax.block_until_ready(y2)
    y2_ref = reference(x2, trans_mat)
    assert y2.shape == (n2, c2, t2, out_joints), y2.shape
    assert jnp.allclose(y2, y2_ref, atol=1e-5, rtol=1e-5)

    print("KERNEL_OK")
</pallas_src>

<mosaic_0001>
module attributes {stable_mosaic.version = 11 : i64} {
  func.func @_matmul_kernel(%arg0: i32, %arg1: memref<32x100xf32, #tpu.memory_space<vmem>>, %arg2: memref<100x120xf32, #tpu.memory_space<vmem>>, %arg3: memref<32x120xf32, #tpu.memory_space<vmem>>) attributes {dimension_semantics = [#tpu.dimension_semantics<parallel>], iteration_bounds = array<i64: 1>, scalar_prefetch = 0 : i64, scratch_operands = 0 : i64, tpu.core_type = #tpu.core_type<tc>, window_params = [{transform_indices = @transform_0, window_bounds = array<i64: 32, 100>}, {pipeline_mode = #tpu.pipeline_mode<synchronous>, transform_indices = @transform_1, window_bounds = array<i64: 100, 120>}, {transform_indices = @transform_2, window_bounds = array<i64: 32, 120>}]} {
    %c0 = arith.constant 0 : index
    %c0_0 = arith.constant 0 : index
    %0 = vector.load %arg1[%c0, %c0_0] : memref<32x100xf32, #tpu.memory_space<vmem>>, vector<32x100xf32>
    %c0_1 = arith.constant 0 : index
    %c0_2 = arith.constant 0 : index
    %1 = vector.load %arg2[%c0_1, %c0_2] : memref<100x120xf32, #tpu.memory_space<vmem>>, vector<100x120xf32>
    %cst = arith.constant dense<0.000000e+00> : vector<32x120xf32>
    %2 = tpu.matmul %0, %1, %cst {dimension_numbers = #tpu.dot_dimension_numbers<[1], [0], [0], [1], [0, 0, 1, 1], [], []>} : vector<32x100xf32>, vector<100x120xf32>, vector<32x120xf32> -> vector<32x120xf32>
    %c0_3 = arith.constant 0 : index
    %c0_4 = arith.constant 0 : index
    %3 = vector.load %arg3[%c0_3, %c0_4] : memref<32x120xf32, #tpu.memory_space<vmem>>, vector<32x120xf32>
    tpu.vector_store %arg3[%c0_3, %c0_4], %2 {strides = array<i32>} : memref<32x120xf32, #tpu.memory_space<vmem>>, vector<32x120xf32>,
    return
  }
  func.func @transform_0(%arg0: i32) -> (i32, i32) {
    %c0_i32 = arith.constant 0 : i32
    %c0_i32_0 = arith.constant 0 : i32
    return %arg0, %c0_i32 : i32, i32
  }
  func.func @transform_1(%arg0: i32) -> (i32, i32) {
    %c0_i32 = arith.constant 0 : i32
    %c0_i32_0 = arith.constant 0 : i32
    %c0_i32_1 = arith.constant 0 : i32
    return %c0_i32, %c0_i32_0 : i32, i32
  }
  func.func @transform_2(%arg0: i32) -> (i32, i32) {
    %c0_i32 = arith.constant 0 : i32
    %c0_i32_0 = arith.constant 0 : i32
    return %arg0, %c0_i32 : i32, i32
  }
}

</mosaic_0001>

<llo_original>
// kernel: tpu_custom_call.1
$region0: #{tpu_custom_call.1}
  #allocation0 [shape = 'u32[]', space=smem, size = 0x4, offset = 0x4, fixed_abs, tag = 'smem constant byte address 0x4 - core index']
  #allocation1 [shape = 'u32[144,128]{1,0:T(1,128)}', space=vmem, size = 0x12000, scoped, tag = 'internal scratch']
  %s0 = inlined_call_operand.hbm [shape: f32[32,100], index: 0, kind: input, shape index: {}]
  %s1 = inlined_call_operand.hbm [shape: f32[100,120], index: 1, kind: input, shape index: {}]
  %s2 = inlined_call_operand.hbm [shape: f32[32,120], index: 2, kind: output, shape index: {}]
  %s3 = sld [smem:[#allocation0]]
  $region26: #{tpu_custom_call.1} parent=0
    _
  %s5 = ssub.s32 1, %s3
  %s6 = scalar_select 0, %s5, %s3
  $region1: #{tpu_custom_call.1} parent=0
    #allocation2 [shape = 'u8[16384]{0}', space=vmem, size = 0x4000, scoped, tag = 'input window, operand 0, single buffered']
    #allocation3 [shape = 's32[1]{0}', space=sflag, size = 0x4, scoped, tag = 'scoped memory for tpu_custom_call.1']
    #allocation4 [shape = 's32[1]{0}', space=sflag, size = 0x4, scoped, tag = 'scoped memory for tpu_custom_call.1']
    #allocation5 [shape = 'u8[53248]{0}', space=vmem, size = 0xd000, scoped, tag = 'input window, operand 1, single buffered']
    #allocation6 [shape = 's32[1]{0}', space=sflag, size = 0x4, scoped, tag = 'scoped memory for tpu_custom_call.1']
    #allocation7 [shape = 'u8[16384]{0}', space=vmem, size = 0x4000, scoped, tag = 'output window, operand 0, single buffered']
    %7 = vsyncpa [#allocation3], 0
    %8 = vsyncpa [#allocation6], 0
    %9 = vsyncpa [#allocation4], 0
    // Predicated region
    $region2: #{tpu_custom_call.1} parent=1 // pred_check
      _
    $region3: #{tpu_custom_call.1} parent=1 // pred_check_branch
      %11 = sbr.rel (0) target = $region5
    $region4: #{tpu_custom_call.1} parent=1 // pred_region
      %s13 = ssub.s32 512, 512
      %14 = vsyncadd [#allocation3], %s13
      %s15 = sshll.u32 [#allocation2], 4
      %s16 = int_to_ptr.vmem [resolvable:$true] %s15
      %21 = dma.hbm_to_vmem [thread:$0]  %s0, 512, %s16, [#allocation3], 128, 128, 8
    $region5: #{tpu_custom_call.1} parent=1 // pred_fallthru
      _
    // Predicated region
    $region6: #{tpu_custom_call.1} parent=1 // pred_check
      _
    $region7: #{tpu_custom_call.1} parent=1 // pred_check_branch
      %23 = sbr.rel (0) target = $region9
    $region8: #{tpu_custom_call.1} parent=1 // pred_region
      %s25 = ssub.s32 1664, 1664
      %26 = vsyncadd [#allocation6], %s25
      %s27 = sshll.u32 [#allocation5], 4
      %s28 = int_to_ptr.vmem [resolvable:$true] %s27
      %33 = dma.hbm_to_vmem [thread:$0]  %s1, 1664, %s28, [#allocation6], 128, 128, 8
    $region9: #{tpu_custom_call.1} parent=1 // pred_fallthru
      _
    // Predicated region
    $region10: #{tpu_custom_call.1} parent=1 // pred_check
      _
    $region11: #{tpu_custom_call.1} parent=1 // pred_check_branch
      %35 = sbr.rel (0) target = $region13
    $region12: #{tpu_custom_call.1} parent=1 // pred_region
      %36 = dma.done [#allocation3], 512
    $region13: #{tpu_custom_call.1} parent=1 // pred_fallthru
      _
    // Predicated region
    $region14: #{tpu_custom_call.1} parent=1 // pred_check
      _
    $region15: #{tpu_custom_call.1} parent=1 // pred_check_branch
      %38 = sbr.rel (0) target = $region17
    $region16: #{tpu_custom_call.1} parent=1 // pred_region
      %39 = dma.done [#allocation6], 1664
    $region17: #{tpu_custom_call.1} parent=1 // pred_fallthru
      _
    %v40 = vld [vmem:[#allocation2] sm:$0xff]
    %v41 = vld [vmem:[#allocation2 + $0x8] sm:$0xff]
    %v42 = vld [vmem:[#allocation2 + $0x10] sm:$0xff]
    %v43 = vld [vmem:[#allocation2 + $0x18] sm:$0xff]
    %v44 = vld [vmem:[#allocation5] sm:$0xff]
    %v45 = vld [vmem:[#allocation5 + $0x8] sm:$0xff]
    %v46 = vld [vmem:[#allocation5 + $0x10] sm:$0xff]
    %v47 = vld [vmem:[#allocation5 + $0x18] sm:$0xff]
    %v48 = vld [vmem:[#allocation5 + $0x20] sm:$0xff]
    %v49 = vld [vmem:[#allocation5 + $0x28] sm:$0xff]
    %v50 = vld [vmem:[#allocation5 + $0x30] sm:$0xff]
    %v51 = vld [vmem:[#allocation5 + $0x38] sm:$0xff]
    %v52 = vld [vmem:[#allocation5 + $0x40] sm:$0xff]
    %v53 = vld [vmem:[#allocation5 + $0x48] sm:$0xff]
    %v54 = vld [vmem:[#allocation5 + $0x50] sm:$0xff]
    %v55 = vld [vmem:[#allocation5 + $0x58] sm:$0xff]
    %v56 = vld [vmem:[#allocation5 + $0x60] sm:$0xf]
    %vm57 = vcmask 818176
    %v59 = vsel %vm57, %v40, 0
    %v62 = vsel %vm57, %v41, 0
    %v65 = vsel %vm57, %v42, 0
    %v68 = vsel %vm57, %v43, 0
    %vm70 = vcmask 1043456
    %v72 = vsel %vm70, %v56, 0
    %74 = vmatprep.subr.mxu0 0.0
    %75 = vmatpush1.msra.mxu0 0.0
    %76 = vmatprep.subr.mxu0 0.0
    %77 = vmatpush1.msra.mxu0 0.0
    %78 = vmatprep.subr.mxu0 0.0
    %79 = vmatpush1.msra.mxu0 0.0
    %80 = vmatprep.subr.mxu0 0.0
    %81 = vmatpush1.msra.mxu0 %v72
    %82 = vmatprep.subr.mxu0 0.0
    %83 = vmatpush1.msra.mxu0 %v55
    %84 = vmatprep.subr.mxu0 0.0
    %85 = vmatpush1.msra.mxu0 %v54
    %86 = vmatprep.subr.mxu0 0.0
    %87 = vmatpush1.msra.mxu0 %v53
    %88 = vmatprep.subr.mxu0 0.0
    %89 = vmatpush1.msra.mxu0 %v52
    %90 = vmatprep.subr.mxu0 0.0
    %91 = vmatpush1.msra.mxu0 %v51
    %92 = vmatprep.subr.mxu0 0.0
    %93 = vmatpush1.msra.mxu0 %v50
    %94 = vmatprep.subr.mxu0 0.0
    %95 = vmatpush1.msra.mxu0 %v49
    %96 = vmatprep.subr.mxu0 0.0
    %97 = vmatpush1.msra.mxu0 %v48
    %98 = vmatprep.subr.mxu0 0.0
    %99 = vmatpush1.msra.mxu0 %v47
    %100 = vmatprep.subr.mxu0 0.0
    %101 = vmatpush1.msra.mxu0 %v46
    %102 = vmatprep.subr.mxu0 0.0
    %103 = vmatpush1.msra.mxu0 %v45
    %104 = vmatprep.subr.mxu0 0.0
    %105 = vmatpush1.msra.mxu0 %v44
    %106 = vmatprep.subr.mxu0 0.0
    %107 = vmatpush2.msra.mxu0 0.0
    %108 = vmatprep.subr.mxu0 0.0
    %109 = vmatpush2.msra.mxu0 0.0
    %110 = vmatprep.subr.mxu0 0.0
    %111 = vmatpush2.msra.mxu0 0.0
    %112 = vmatprep.subr.mxu0 0.0
    %113 = vmatpush2.msra.mxu0 0.0
    %114 = vmatprep.subr.mxu0 0.0
    %115 = vmatpush2.msra.mxu0 0.0
    %116 = vmatprep.subr.mxu0 0.0
    %117 = vmatpush2.msra.mxu0 0.0
    %118 = vmatprep.subr.mxu0 0.0
    %119 = vmatpush2.msra.mxu0 0.0
    %120 = vmatprep.subr.mxu0 0.0
    %121 = vmatpush2.msra.mxu0 0.0
    %122 = vmatprep.subr.mxu0 0.0
    %123 = vmatpush2.msra.mxu0 0.0
    %124 = vmatprep.subr.mxu0 0.0
    %125 = vmatpush2.msra.mxu0 0.0
    %126 = vmatprep.subr.mxu0 0.0
    %127 = vmatpush2.msra.mxu0 0.0
    %128 = vmatprep.subr.mxu0 0.0
    %129 = vmatpush2.msra.mxu0 0.0
    %130 = vmatprep.subr.mxu0 0.0
    %131 = vmatpush2.msra.mxu0 0.0
    %132 = vmatprep.subr.mxu0 0.0
    %133 = vmatpush2.msra.mxu0 0.0
    %134 = vmatprep.subr.mxu0 0.0
    %135 = vmatpush2.msra.mxu0 0.0
    %136 = vmatprep.subr.mxu0 0.0
    %137 = vmatpush2.msra.mxu0 0.0
    %138 = vmatprep.mubr.f32.mxu0 0.0
    %139 = vmatmul.mubr.f32.gmra.mxu0 %v59
    %v140 = vpop.f32.mrf.mxu0
    %v141 = vadd.f32 0.0, %v140
    %v142 = vpop.f32.mrf.mxu0
    %143 = vmatprep.mubr.f32.mxu0 0.0
    %144 = vmatmul.mubr.f32.gmra.mxu0 %v62
    %v145 = vpop.f32.mrf.mxu0
    %v146 = vadd.f32 0.0, %v145
    %v147 = vpop.f32.mrf.mxu0
    %148 = vmatprep.mubr.f32.mxu0 0.0
    %149 = vmatmul.mubr.f32.gmra.mxu0 %v65
    %v150 = vpop.f32.mrf.mxu0
    %v151 = vadd.f32 0.0, %v150
    %v152 = vpop.f32.mrf.mxu0
    %153 = vmatprep.mubr.f32.mxu0 0.0
    %154 = vmatmul.mubr.f32.gmra.mxu0 %v68
    %v155 = vpop.f32.mrf.mxu0
    %v156 = vadd.f32 0.0, %v155
    %v157 = vpop.f32.mrf.mxu0
    %158 = vdwg.mxu0
    %vm159 = vcmask 982016
    %160 = vst.msk [vmem:[#allocation7] sm:$0xff] %vm159, %v141
    %161 = vst.msk [vmem:[#allocation7 + $0x8] sm:$0xff] %vm159, %v146
    %162 = vst.msk [vmem:[#allocation7 + $0x10] sm:$0xff] %vm159, %v151
    %163 = vst.msk [vmem:[#allocation7 + $0x18] sm:$0xff] %vm159, %v156
    // Predicated region
    $region18: #{tpu_custom_call.1} parent=1 // pred_check
      _
    $region19: #{tpu_custom_call.1} parent=1 // pred_check_branch
      %165 = sbr.rel (0) target = $region21
    $region20: #{tpu_custom_call.1} parent=1 // pred_region
      %s167 = ssub.s32 512, 512
      %168 = vsyncadd [#allocation4], %s167
      %s169 = sshll.u32 [#allocation7], 4
      %s170 = int_to_ptr.vmem [resolvable:$true] %s169
      %175 = dma.vmem_to_hbm [thread:$0]  %s170, 512, %s2, [#allocation4], 128, 128, 8
    $region21: #{tpu_custom_call.1} parent=1 // pred_fallthru
      _
    // Predicated region
    $region22: #{tpu_custom_call.1} parent=1 // pred_check
      _
    $region23: #{tpu_custom_call.1} parent=1 // pred_check_branch
      %177 = sbr.rel (0) target = $region25
    $region24: #{tpu_custom_call.1} parent=1 // pred_region
      %178 = dma.done [#allocation4], 512
    $region25: #{tpu_custom_call.1} parent=1 // pred_fallthru
      _
    %179 = vsyncpa [#allocation3], 1
    %180 = vsyncpa [#allocation6], 1
    %181 = vsyncpa [#allocation4], 1

</llo_original>
